<compile_context>
chip_gen: v6e
topology: v6e:2x2x1
jax: 0.10.0
libtpu: 0.0.40
codegen_flags: <defaults>
</compile_context>

<pallas_src>
import jax
import jax.numpy as jnp
from jax.experimental import pallas as pl
from jax.experimental.pallas import tpu as pltpu


# ----------------------------- Pallas kernel ------------------------------- #

def _make_fused_kernel(tm: int):
    """Kernel factory (closes over the M-tile size for in-kernel P^T slicing)."""

    def kernel(x_ref, wt_ref, b_ref, pt_ref, o_ref):
        # x:(1,K,TM) bf16   wt:(D,K) bf16   b:(D,1) f32
        # pt:(HW_pad,EE) bf16 (fully VMEM-resident)   o:(1,D,EE) f32 (resident acc)
        m = pl.program_id(1)

        @pl.when(m == 0)
        def _():
            o_ref[...] = jnp.zeros_like(o_ref)

        # bf16 MXU matmul, f32 accumulation; bias + ReLU epilogue stays in f32.
        feats = jnp.dot(wt_ref[...], x_ref[0],
                        preferred_element_type=jnp.float32)          # (D, TM)
        feats = jnp.maximum(feats + b_ref[...], 0.0)

        # Pooling matmul in bf16 against an in-kernel slice of the resident P^T.
        start = pl.multiple_of(m * tm, tm)
        p_slice = pt_ref[pl.ds(start, tm), :]                         # (TM, EE) bf16
        o_ref[0] += jnp.dot(feats.astype(jnp.bfloat16), p_slice,
                            preferred_element_type=jnp.float32)       # (D, EE)

    return kernel


# ------------------------------ glue / wrappers ----------------------------- #

def adaptive_pool_matrix(in_size: int, out_size: int) -> jnp.ndarray:
    """Row-stochastic matrix reproducing torch.nn.AdaptiveAvgPool2d window math."""
    rows = []
    for i in range(out_size):
        start = (i * in_size) // out_size
        end = -((-(i + 1) * in_size) // out_size)  # ceil((i+1)*in/out)
        inv = 1.0 / float(end - start)
        rows.append([inv if start <= j < end else 0.0 for j in range(in_size)])
    return jnp.array(rows, dtype=jnp.float32)


def _round_up(x: int, m: int) -> int:
    return -(-x // m) * m


def _tile_plan(hw: int, cap: int = 8192):
    """Return (TM, MT, HW_pad).

    If the whole patch grid fits in one tile, TM == HW_pad (full-extent block,
    any size allowed).  Otherwise TM is a multiple of 128 (Pallas last-dim
    block constraint + aligned sublane slicing of P^T) and HW is padded
    host-side to MT*TM, so there is never a ragged tail nor a giant fallback
    tile that blows VMEM (keeps per-step footprint small even on v7x's 64 MiB).
    """
    if hw <= cap:
        hw_pad = _round_up(hw, 16)          # bf16 sublane pack for P^T rows
        return hw_pad, 1, hw_pad
    mt = -(-hw // cap)
    tm = _round_up(-(-hw // mt), 128)
    return tm, mt, tm * mt


def fused_encode(patches_t: jnp.ndarray, wt_bf16: jnp.ndarray, b_col: jnp.ndarray,
                 pool_t_bf16: jnp.ndarray, tm: int, mt: int) -> jnp.ndarray:
    """patches_t:(N,K,HW_pad) bf16, wt:(D,K) bf16, b:(D,1) f32,
    pool_t:(HW_pad,EE) bf16  ->  (N, D, EE) f32."""
    N, K, HWp = patches_t.shape
    D = wt_bf16.shape[0]
    EE = pool_t_bf16.shape[1]

    cost = pl.CostEstimate(
        flops=2 * N * HWp * K * D + 2 * N * HWp * D * EE,
        transcendentals=0,
        bytes_accessed=(patches_t.size * 2 + wt_bf16.size * 2
                        + b_col.size * 4 + pool_t_bf16.size * 2   # P^T counted once
                        + N * D * EE * 4),
    )

    return pl.pallas_call(
        _make_fused_kernel(tm),
        out_shape=jax.ShapeDtypeStruct((N, D, EE), jnp.float32),
        grid_spec=pltpu.PrefetchScalarGridSpec(
            num_scalar_prefetch=0,
            grid=(N, mt),
            in_specs=[
                pl.BlockSpec((1, K, tm), lambda n, m: (n, 0, m)),   # contiguous patch slab
                pl.BlockSpec((D, K), lambda n, m: (0, 0)),          # weights (loaded once)
                pl.BlockSpec((D, 1), lambda n, m: (0, 0)),          # bias    (loaded once)
                pl.BlockSpec((HWp, EE), lambda n, m: (0, 0)),       # P^T fully resident
            ],
            out_specs=pl.BlockSpec((1, D, EE), lambda n, m: (n, 0, 0)),
            scratch_shapes=[],                                       # accumulate in o_ref
        ),
        compiler_params=pltpu.CompilerParams(
            dimension_semantics=("parallel", "arbitrary")),
        cost_estimate=cost,
    )(patches_t, wt_bf16, b_col, pool_t_bf16)


class AttentionEncoderPallas:
    """Pallas port of AttentionEncoder (CNN backbone + AdaptiveAvgPool2d).

    # TODO(synk): the pretrained ResNet-101 backbone (external weights, ~100 layers)
    # has no clean in-script Pallas equivalent; it is replaced by a deterministic
    # strided patch-projection + ReLU feature extractor with the same NCHW contract
    # (N, 3, H, W) -> (N, D, H/stride, W/stride).  The adaptive pool matches torch
    # AdaptiveAvgPool2d window math (weights stored in bf16).
    """

    def __init__(self, encode_size: int, feat_dim: int = 128, patch: int = 4,
                 key=jax.random.PRNGKey(0)):
        self.encode_size = encode_size
        self.feat_dim = feat_dim
        self.patch = patch
        k1, k2 = jax.random.split(key)
        kdim = 3 * patch * patch
        self.w = jax.random.normal(k1, (kdim, feat_dim), jnp.float32) / jnp.sqrt(float(kdim))
        self.b = jax.random.normal(k2, (1, feat_dim), jnp.float32) * 0.01
        self.wt_bf16 = self.w.T.astype(jnp.bfloat16)          # (D, K)
        self.b_col = self.b.reshape(feat_dim, 1)               # (D, 1) f32

    def __call__(self, imgs: jnp.ndarray) -> jnp.ndarray:
        N, C, H, W = imgs.shape
        p = self.patch
        Hp, Wp = H // p, W // p
        HW = Hp * Wp
        D = self.feat_dim
        E = self.encode_size
        EE = E * E

        # NCHW -> transposed patch matrix (N, K, HW): last dim contiguous spatial
        # positions -> wide, contiguous HBM DMA rows inside the kernel.
        patches_t = imgs.reshape(N, C, Hp, p, Wp, p).transpose(0, 1, 3, 5, 2, 4)
        patches_t = patches_t.reshape(N, C * p * p, HW).astype(jnp.bfloat16)

        # Adaptive-pool operator as a single matrix, stored transposed & bf16.
        pool = jnp.kron(adaptive_pool_matrix(Hp, E), adaptive_pool_matrix(Wp, E))  # (EE, HW)
        pool_t = pool.T.astype(jnp.bfloat16)                                       # (HW, EE)

        tm, mt, hw_pad = _tile_plan(HW)
        if hw_pad > HW:
            # Zero-padded P^T rows make padded patch columns contribute nothing.
            patches_t = jnp.pad(patches_t, ((0, 0), (0, 0), (0, hw_pad - HW)))
            pool_t = jnp.pad(pool_t, ((0, hw_pad - HW), (0, 0)))

        out = fused_encode(patches_t, self.wt_bf16, self.b_col, pool_t, tm, mt)  # (N, D, EE)
        return out.reshape(N, D, E, E)                                            # free reshape


# ----------------------------------- main ----------------------------------- #

if __name__ == "__main__":
    key = jax.random.PRNGKey(0)
    imgs = jax.random.normal(key, (2, 3, 32, 32), dtype=jnp.float32)

    encoder = AttentionEncoderPallas(encode_size=4, feat_dim=128, patch=4,
                                     key=jax.random.PRNGKey(0))
    out = encoder(imgs)
    out = jax.block_until_ready(out)
    assert out.shape == (2, 128, 4, 4), out.shape

    # Reference check against plain JAX (same bf16 casts, f32 accumulation).
    N, C, H, W = imgs.shape
    p = encoder.patch
    Hp, Wp = H // p, W // p
    HW = Hp * Wp
    E = encoder.encode_size
    D = encoder.feat_dim

    patches_ref = imgs.reshape(N, C, Hp, p, Wp, p).transpose(0, 1, 3, 5, 2, 4)
    patches_ref = patches_ref.reshape(N, C * p * p, HW).astype(jnp.bfloat16)
    feats_ref = jnp.einsum('dk,nkm->ndm',
                           encoder.wt_bf16.astype(jnp.float32),
                           patches_ref.astype(jnp.float32)) + encoder.b_col
    feats_ref = jnp.maximum(feats_ref, 0.0).astype(jnp.bfloat16)       # (N, D, HW)
    pool_t_ref = jnp.kron(adaptive_pool_matrix(Hp, E),
                          adaptive_pool_matrix(Wp, E)).T.astype(jnp.bfloat16)
    ref = jnp.einsum('ndm,me->nde',
                     feats_ref.astype(jnp.float32), pool_t_ref.astype(jnp.float32))
    ref = ref.reshape(N, D, E, E)

    err = float(jnp.max(jnp.abs(out - ref)))
    assert jnp.allclose(out, ref, atol=2e-2, rtol=2e-2), err

    print("KERNEL_OK")
</pallas_src>

<mosaic_0001>
module attributes {stable_mosaic.version = 11 : i64} {
  func.func @kernel(%arg0: i32, %arg1: i32, %arg2: memref<1x48x64xbf16, #tpu.memory_space<vmem>>, %arg3: memref<128x48xbf16, #tpu.memory_space<vmem>>, %arg4: memref<128x1xf32, #tpu.memory_space<vmem>>, %arg5: memref<64x16xbf16, #tpu.memory_space<vmem>>, %arg6: memref<1x128x16xf32, #tpu.memory_space<vmem>>) attributes {dimension_semantics = [#tpu.dimension_semantics<parallel>, #tpu.dimension_semantics<arbitrary>], iteration_bounds = array<i64: 2, 1>, scalar_prefetch = 0 : i64, scratch_operands = 0 : i64, tpu.core_type = #tpu.core_type<tc>, window_params = [{transform_indices = @transform_0, window_bounds = array<i64: 1, 48, 64>}, {pipeline_mode = #tpu.pipeline_mode<synchronous>, transform_indices = @transform_1, window_bounds = array<i64: 128, 48>}, {pipeline_mode = #tpu.pipeline_mode<synchronous>, transform_indices = @transform_2, window_bounds = array<i64: 128, 1>}, {pipeline_mode = #tpu.pipeline_mode<synchronous>, transform_indices = @transform_3, window_bounds = array<i64: 64, 16>}, {transform_indices = @transform_4, window_bounds = array<i64: 1, 128, 16>}]} {
    %c0_i32 = arith.constant 0 : i32
    %0 = arith.cmpi eq, %arg1, %c0_i32 : i32
    %1 = arith.extui %0 : i1 to i32
    %c0_i32_0 = arith.constant 0 : i32
    %2 = arith.cmpi ne, %1, %c0_i32_0 : i32
    scf.if %2 {
      %cst_16 = arith.constant 0.000000e+00 : f32
      %24 = vector.broadcast %cst_16 : f32 to vector<1x128x16xf32>
      %c0_17 = arith.constant 0 : index
      %c0_18 = arith.constant 0 : index
      %c0_19 = arith.constant 0 : index
      %25 = vector.load %arg6[%c0_17, %c0_18, %c0_19] : memref<1x128x16xf32, #tpu.memory_space<vmem>>, vector<1x128x16xf32>
      tpu.vector_store %arg6[%c0_17, %c0_18, %c0_19], %24 {strides = array<i32>} : memref<1x128x16xf32, #tpu.memory_space<vmem>>, vector<1x128x16xf32>,
    } else {
    }
    %c0 = arith.constant 0 : index
    %c0_1 = arith.constant 0 : index
    %3 = vector.load %arg3[%c0, %c0_1] : memref<128x48xbf16, #tpu.memory_space<vmem>>, vector<128x48xbf16>
    %c0_2 = arith.constant 0 : index
    %c0_3 = arith.constant 0 : index
    %c0_4 = arith.constant 0 : index
    %4 = vector.load %arg2[%c0_2, %c0_3, %c0_4] : memref<1x48x64xbf16, #tpu.memory_space<vmem>>, vector<1x48x64xbf16>
    %5 = vector.shape_cast %4 : vector<1x48x64xbf16> to vector<48x64xbf16>
    %cst = arith.constant dense<0.000000e+00> : vector<128x64xf32>
    %6 = tpu.matmul %3, %5, %cst {dimension_numbers = #tpu.dot_dimension_numbers<[1], [0], [0], [1], [0, 0, 1, 1], [], []>} : vector<128x48xbf16>, vector<48x64xbf16>, vector<128x64xf32> -> vector<128x64xf32>
    %c0_5 = arith.constant 0 : index
    %c0_6 = arith.constant 0 : index
    %7 = vector.load %arg4[%c0_5, %c0_6] : memref<128x1xf32, #tpu.memory_space<vmem>>, vector<128x1xf32>
    %8 = vector.broadcast %7 : vector<128x1xf32> to vector<128x64xf32>
    %9 = arith.addf %6, %8 : vector<128x64xf32>
    %cst_7 = arith.constant 0.000000e+00 : f32
    %10 = vector.broadcast %cst_7 : f32 to vector<128x64xf32>
    %11 = arith.maximumf %9, %10 : vector<128x64xf32>
    %c64_i32 = arith.constant 64 : i32
    %12 = arith.muli %arg1, %c64_i32 : i32
    %13 = tpu.assume_multiple %12, 64 : i32
    %14 = arith.index_cast %13 : i32 to index
    %c0_8 = arith.constant 0 : index
    %15 = vector.load %arg5[%14, %c0_8] : memref<64x16xbf16, #tpu.memory_space<vmem>>, vector<64x16xbf16>
    %c0_9 = arith.constant 0 : index
    %c0_10 = arith.constant 0 : index
    %c0_11 = arith.constant 0 : index
    %16 = vector.load %arg6[%c0_9, %c0_10, %c0_11] : memref<1x128x16xf32, #tpu.memory_space<vmem>>, vector<1x128x16xf32>
    %17 = vector.shape_cast %16 : vector<1x128x16xf32> to vector<128x16xf32>
    %18 = arith.truncf %11 : vector<128x64xf32> to vector<128x64xbf16>
    %cst_12 = arith.constant dense<0.000000e+00> : vector<128x16xf32>
    %19 = tpu.matmul %18, %15, %cst_12 {dimension_numbers = #tpu.dot_dimension_numbers<[1], [0], [0], [1], [0, 0, 1, 1], [], []>} : vector<128x64xbf16>, vector<64x16xbf16>, vector<128x16xf32> -> vector<128x16xf32>
    %20 = arith.addf %17, %19 : vector<128x16xf32>
    %c0_13 = arith.constant 0 : index
    %c0_14 = arith.constant 0 : index
    %c0_15 = arith.constant 0 : index
    %21 = vector.load %arg6[%c0_13, %c0_14, %c0_15] : memref<1x128x16xf32, #tpu.memory_space<vmem>>, vector<1x128x16xf32>
    %22 = vector.shape_cast %21 : vector<1x128x16xf32> to vector<128x16xf32>
    %23 = vector.shape_cast %20 : vector<128x16xf32> to vector<1x128x16xf32>
    tpu.vector_store %arg6[%c0_13, %c0_14, %c0_15], %23 {strides = array<i32>} : memref<1x128x16xf32, #tpu.memory_space<vmem>>, vector<1x128x16xf32>,
    return
  }
  func.func @transform_0(%arg0: i32, %arg1: i32) -> (i32, i32, i32) {
    %c0_i32 = arith.constant 0 : i32
    %c0_i32_0 = arith.constant 0 : i32
    return %arg0, %c0_i32, %arg1 : i32, i32, i32
  }
  func.func @transform_1(%arg0: i32, %arg1: i32) -> (i32, i32) {
    %c0_i32 = arith.constant 0 : i32
    %c0_i32_0 = arith.constant 0 : i32
    %c0_i32_1 = arith.constant 0 : i32
    return %c0_i32, %c0_i32_0 : i32, i32
  }
  func.func @transform_2(%arg0: i32, %arg1: i32) -> (i32, i32) {
    %c0_i32 = arith.constant 0 : i32
    %c0_i32_0 = arith.constant 0 : i32
    %c0_i32_1 = arith.constant 0 : i32
    return %c0_i32, %c0_i32_0 : i32, i32
  }
  func.func @transform_3(%arg0: i32, %arg1: i32) -> (i32, i32) {
    %c0_i32 = arith.constant 0 : i32
    %c0_i32_0 = arith.constant 0 : i32
    %c0_i32_1 = arith.constant 0 : i32
    return %c0_i32, %c0_i32_0 : i32, i32
  }
  func.func @transform_4(%arg0: i32, %arg1: i32) -> (i32, i32, i32) {
    %c0_i32 = arith.constant 0 : i32
    %c0_i32_0 = arith.constant 0 : i32
    %c0_i32_1 = arith.constant 0 : i32
    return %arg0, %c0_i32, %c0_i32_0 : i32, i32, i32
  }
}

</mosaic_0001>

<llo_original>
// kernel: tpu_custom_call.1
$region0: #{tpu_custom_call.1}
  #allocation0 [shape = 'u32[]', space=smem, size = 0x4, offset = 0x4, fixed_abs, tag = 'smem constant byte address 0x4 - core index']
  #allocation1 [shape = 'u32[144,128]{1,0:T(1,128)}', space=vmem, size = 0x12000, scoped, tag = 'internal scratch']
  %s0 = inlined_call_operand.vmem [shape: bf16[2,48,64], index: 0, kind: input, shape index: {}]
  %s1 = inlined_call_operand.vmem [shape: bf16[128,48], index: 1, kind: input, shape index: {}]
  %s2 = inlined_call_operand.vmem [shape: f32[128,1], index: 2, kind: input, shape index: {}]
  %s3 = inlined_call_operand.vmem [shape: bf16[64,16], index: 3, kind: input, shape index: {}]
  %s4 = inlined_call_operand.vmem [shape: f32[2,128,16], index: 4, kind: output, shape index: {}]
  %s5 = sld [smem:[#allocation0]]
  $region53: #{tpu_custom_call.1} parent=0
    _
  %s7 = ssub.s32 1, %s5
  %s8 = scalar_select 0, %s7, %s5
  loop: start=0, step=1, limit=4
  $region2: #{tpu_custom_call.1} parent=0 // loop_pre_header
    _
  $region3: #{tpu_custom_call.1} parent=0 // loop_header
    %s10 = sphi 0, %s14
    %p11 = scmp.ge.s32.totalorder %s10, 4
    %s17 = sphi 0, %s29
    %s18 = sphi 0, %s25
    %s19 = sphi 0, %s17
    %s20 = sphi 0, %s18
    %s21 = sphi 0, %s19
    %s22 = sphi 0, %s20
    %s34 = sphi 0, %s36
    %s37 = sphi 0, %s34
    %s38 = sphi 0, %s37
    %s54 = sphi 0, %s38
    %s58 = sphi 0, %s58
    %s60 = sphi 0, %s58
    %s61 = sphi 0, %s60
    %s75 = sphi 0, %s61
    %s79 = sphi 0, %s79
    %s81 = sphi 0, %s79
    %s82 = sphi 0, %s81
    %s96 = sphi 0, %s82
    %s100 = sphi 0, %s100
    %s102 = sphi 0, %s100
    %s103 = sphi 0, %s102
    %s117 = sphi 0, %s103
    %s123 = sphi 0, %s125
    %s126 = sphi 0, %s123
    %s127 = sphi 0, %s126
    %s143 = sphi 0, %s127
  $region4: #{tpu_custom_call.1} parent=0 // loop_header_branch
    %13 = sbr.rel (%p11) target = $region8
  $region5: #{tpu_custom_call.1} parent=0 // loop_body
    %s15 = ssub.s32 %s10, 1
    %s16 = ssub.s32 %s10, 2
    %s23 = sadd.s32 1, %s18
    %p24 = scmp.ge.s32.totalorder %s23, 1
    %s25 = scalar_select %p24, 0, %s23
    %s26 = sadd.s32 1, %s17
    %s27 = scalar_select %p24, %s26, %s17
    %p28 = scmp.ge.s32.totalorder %s27, 2
    %s29 = scalar_select %p28, 0, %s27
    %s30 = ssub.s32 %s17, %s29
    %s31 = ssub.s32 %s18, %s25
    %s32 = sor.u32 %s30, %s31
    %p33 = scmp.eq.s32.totalorder %s32, 0
    %s35 = sadd.s32 %s34, 1
    %s36 = scalar_select %p33, %s34, %s35
    %p39 = pneg %p33
    %p40 = scmp.eq.s32.totalorder %s10, 1
    %p41 = por %p39, %p40
    %p42 = scmp.ne.s32.totalorder %s34, %s37
    %p43 = scmp.eq.s32.totalorder %s10, 0
    %p44 = por %p42, %p43
    %p45 = scmp.ne.s32.totalorder %s34, %s37
    %p46 = scmp.eq.s32.totalorder %s15, 1
    %p47 = por %p45, %p46
    %p48 = scmp.ne.s32.totalorder %s37, %s38
    %p49 = scmp.eq.s32.totalorder %s15, 0
    %p50 = por %p48, %p49
    %p51 = scmp.ne.s32.totalorder %s37, %s38
    %p52 = scmp.eq.s32.totalorder %s16, 1
    %p53 = por %p51, %p52
    %p55 = scmp.ne.s32.totalorder %s38, %s54
    %p56 = scmp.eq.s32.totalorder %s16, 0
    %p57 = por %p55, %p56
    %s59 = sadd.s32 %s58, 1
    %p62 = scmp.eq.s32.totalorder %s10, 1
    %p63 = scmp.ne.s32.totalorder %s58, %s60
    %p64 = scmp.eq.s32.totalorder %s10, 0
    %p65 = por %p63, %p64
    %p66 = scmp.ne.s32.totalorder %s58, %s60
    %p67 = scmp.eq.s32.totalorder %s15, 1
    %p68 = por %p66, %p67
    %p69 = scmp.ne.s32.totalorder %s60, %s61
    %p70 = scmp.eq.s32.totalorder %s15, 0
    %p71 = por %p69, %p70
    %p72 = scmp.ne.s32.totalorder %s60, %s61
    %p73 = scmp.eq.s32.totalorder %s16, 1
    %p74 = por %p72, %p73
    %p76 = scmp.ne.s32.totalorder %s61, %s75
    %p77 = scmp.eq.s32.totalorder %s16, 0
    %p78 = por %p76, %p77
    %s80 = sadd.s32 %s79, 1
    %p83 = scmp.eq.s32.totalorder %s10, 1
    %p84 = scmp.ne.s32.totalorder %s79, %s81
    %p85 = scmp.eq.s32.totalorder %s10, 0
    %p86 = por %p84, %p85
    %p87 = scmp.ne.s32.totalorder %s79, %s81
    %p88 = scmp.eq.s32.totalorder %s15, 1
    %p89 = por %p87, %p88
    %p90 = scmp.ne.s32.totalorder %s81, %s82
    %p91 = scmp.eq.s32.totalorder %s15, 0
    %p92 = por %p90, %p91
    %p93 = scmp.ne.s32.totalorder %s81, %s82
    %p94 = scmp.eq.s32.totalorder %s16, 1
    %p95 = por %p93, %p94
    %p97 = scmp.ne.s32.totalorder %s82, %s96
    %p98 = scmp.eq.s32.totalorder %s16, 0
    %p99 = por %p97, %p98
    %s101 = sadd.s32 %s100, 1
    %p104 = scmp.eq.s32.totalorder %s10, 1
    %p105 = scmp.ne.s32.totalorder %s100, %s102
    %p106 = scmp.eq.s32.totalorder %s10, 0
    %p107 = por %p105, %p106
    %p108 = scmp.ne.s32.totalorder %s100, %s102
    %p109 = scmp.eq.s32.totalorder %s15, 1
    %p110 = por %p108, %p109
    %p111 = scmp.ne.s32.totalorder %s102, %s103
    %p112 = scmp.eq.s32.totalorder %s15, 0
    %p113 = por %p111, %p112
    %p114 = scmp.ne.s32.totalorder %s102, %s103
    %p115 = scmp.eq.s32.totalorder %s16, 1
    %p116 = por %p114, %p115
    %p118 = scmp.ne.s32.totalorder %s103, %s117
    %p119 = scmp.eq.s32.totalorder %s16, 0
    %p120 = por %p118, %p119
    %s121 = ssub.s32 %s17, %s29
    %p122 = scmp.eq.s32.totalorder %s121, 0
    %s124 = sadd.s32 %s123, 1
    %s125 = scalar_select %p122, %s123, %s124
    %p128 = pneg %p122
    %p129 = scmp.eq.s32.totalorder %s10, 1
    %p130 = por %p128, %p129
    %p131 = scmp.ne.s32.totalorder %s123, %s126
    %p132 = scmp.eq.s32.totalorder %s10, 0
    %p133 = por %p131, %p132
    %p134 = scmp.ne.s32.totalorder %s123, %s126
    %p135 = scmp.eq.s32.totalorder %s15, 1
    %p136 = por %p134, %p135
    %p137 = scmp.ne.s32.totalorder %s126, %s127
    %p138 = scmp.eq.s32.totalorder %s15, 0
    %p139 = por %p137, %p138
    %p140 = scmp.ne.s32.totalorder %s126, %s127
    %p141 = scmp.eq.s32.totalorder %s16, 1
    %p142 = por %p140, %p141
    %p144 = scmp.ne.s32.totalorder %s127, %s143
    %p145 = scmp.eq.s32.totalorder %s16, 0
    %p146 = por %p144, %p145
    %p147 = scmp.le.s32.totalorder 1, %s10
    %p148 = scmp.lt.s32.totalorder %s10, 3
    %p149 = pnand %p147, %p148
    %p150 = pneg %p149
    // Predicated region
    $region9: #{tpu_custom_call.1} parent=5 // pred_check
      _
    $region10: #{tpu_custom_call.1} parent=5 // pred_check_branch
      %152 = sbr.rel (%p149) target = $region12
    $region11: #{tpu_custom_call.1} parent=5 // pred_region
      %s153 = ssub.s32 %s10, 1
      // Predicated region
      $region13: #{tpu_custom_call.1} parent=11 // pred_check
        %p154 = pneg %p71
      $region14: #{tpu_custom_call.1} parent=11 // pred_check_branch
        %156 = sbr.rel (%p154) target = $region16
      $region15: #{tpu_custom_call.1} parent=11 // pred_region
        _
      $region16: #{tpu_custom_call.1} parent=11 // pred_fallthru
        _
      // Predicated region
      $region17: #{tpu_custom_call.1} parent=11 // pred_check
        %p157 = pneg %p92
      $region18: #{tpu_custom_call.1} parent=11 // pred_check_branch
        %159 = sbr.rel (%p157) target = $region20
      $region19: #{tpu_custom_call.1} parent=11 // pred_region
        _
      $region20: #{tpu_custom_call.1} parent=11 // pred_fallthru
        _
      // Predicated region
      $region21: #{tpu_custom_call.1} parent=11 // pred_check
        %p160 = pneg %p113
      $region22: #{tpu_custom_call.1} parent=11 // pred_check_branch
        %162 = sbr.rel (%p160) target = $region24
      $region23: #{tpu_custom_call.1} parent=11 // pred_region
        _
      $region24: #{tpu_custom_call.1} parent=11 // pred_fallthru
        _
    $region12: #{tpu_custom_call.1} parent=5 // pred_fallthru
      _
    %p163 = scmp.lt.s32.totalorder %s10, 2
    // Predicated region
    $region25: #{tpu_custom_call.1} parent=5 // pred_check
      %p164 = pneg %p163
    $region26: #{tpu_custom_call.1} parent=5 // pred_check_branch
      %166 = sbr.rel (%p164) target = $region28
    $region27: #{tpu_custom_call.1} parent=5 // pred_region
      // Predicated region
      $region29: #{tpu_custom_call.1} parent=27 // pred_check
        %p167 = pneg %p44
      $region30: #{tpu_custom_call.1} parent=27 // pred_check_branch
        %169 = sbr.rel (%p167) target = $region32
      $region31: #{tpu_custom_call.1} parent=27 // pred_region
        %p170 = scmp.lt.s32.totalorder %s17, 1
        %s171 = scalar_select %p170, %s17, 1
        %p172 = scmp.lt.s32.totalorder %s18, 0
        %s173 = scalar_select %p172, %s18, 0
        %s174 = smul.addr %s171, 6
        %s175 = sadd.s32 %s173, %s174
        %s176 = smul.addr %s175, 4
        %s177 = scalar_lea.vmem %s0, %s176
      $region32: #{tpu_custom_call.1} parent=27 // pred_fallthru
        _
    $region28: #{tpu_custom_call.1} parent=5 // pred_fallthru
      _
    %p178 = scmp.le.s32.totalorder 1, %s10
    %p179 = scmp.lt.s32.totalorder %s10, 3
    %p180 = pnand %p178, %p179
    %p181 = pneg %p180
    // Predicated region
    $region33: #{tpu_custom_call.1} parent=5 // pred_check
      _
    $region34: #{tpu_custom_call.1} parent=5 // pred_check_branch
      %183 = sbr.rel (%p180) target = $region36
    $region35: #{tpu_custom_call.1} parent=5 // pred_region
      %s184 = ssub.s32 %s10, 1
      %p185 = scmp.lt.s32.totalorder %s19, 1
      %s186 = scalar_select %p185, %s19, 1
      %p187 = scmp.lt.s32.totalorder %s20, 0
      %s188 = scalar_select %p187, %s20, 0
      %s189 = smul.addr %s186, 6
      %s190 = sadd.s32 %s188, %s189
      %s191 = smul.addr %s190, 4
      %s192 = scalar_lea.vmem %s0, %s191
      %p193 = pneg %p50
      %p194 = pneg %p47
      %p195 = pneg %p71
      %p196 = pneg %p68
      %p197 = pneg %p92
      %p198 = pneg %p89
      %p199 = pneg %p113
      %p200 = pneg %p110
      %p201 = pneg %p139
      %p202 = pneg %p136
      %p203 = scmp.lt.s32.totalorder %s19, 1
      %s204 = scalar_select %p203, %s19, 1
      %s205 = smul.addr %s204, 16
      %s206 = smul.addr %s205, 8
      %s207 = scalar_lea.vmem %s4, %s206
      %p208 = scmp.lt.s32.totalorder %s19, 1
      %s209 = scalar_select %p208, %s19, 1
      %p210 = scmp.lt.s32.totalorder %s20, 0
      %s211 = scalar_select %p210, %s20, 0
      %s212 = smul.addr %s209, 6
      %s213 = sadd.s32 %s211, %s212
      %s214 = smul.addr %s213, 4
      %s215 = scalar_lea.vmem %s0, %s214
      %p216 = scmp.lt.s32.totalorder %s19, 1
      %s217 = scalar_select %p216, %s19, 1
      %s218 = smul.addr %s217, 16
      %s219 = smul.addr %s218, 8
      %s220 = scalar_lea.vmem %s4, %s219
      %p222 = scmp.eq.s32.totalorder %s20, 0
      // Predicated region
      $region37: #{tpu_custom_call.1} parent=35 // pred_check
        %p223 = pneg %p222
      $region38: #{tpu_custom_call.1} parent=35 // pred_check_branch
        %225 = sbr.rel (%p223) target = $region40
      $region39: #{tpu_custom_call.1} parent=35 // pred_region
        %vm226 = vcmask 130048
        %227 = vst.msk [vmem:[%s220] sm:$0xff] %vm226, 0.0
        %228 = vst.msk [vmem:[%s220 + $0x8] sm:$0xff] %vm226, 0.0
        %229 = vst.msk [vmem:[%s220 + $0x10] sm:$0xff] %vm226, 0.0
        %230 = vst.msk [vmem:[%s220 + $0x18] sm:$0xff] %vm226, 0.0
        %231 = vst.msk [vmem:[%s220 + $0x20] sm:$0xff] %vm226, 0.0
        %232 = vst.msk [vmem:[%s220 + $0x28] sm:$0xff] %vm226, 0.0
        %233 = vst.msk [vmem:[%s220 + $0x30] sm:$0xff] %vm226, 0.0
        %234 = vst.msk [vmem:[%s220 + $0x38] sm:$0xff] %vm226, 0.0
        %235 = vst.msk [vmem:[%s220 + $0x40] sm:$0xff] %vm226, 0.0
        %236 = vst.msk [vmem:[%s220 + $0x48] sm:$0xff] %vm226, 0.0
        %237 = vst.msk [vmem:[%s220 + $0x50] sm:$0xff] %vm226, 0.0
        %238 = vst.msk [vmem:[%s220 + $0x58] sm:$0xff] %vm226, 0.0
        %239 = vst.msk [vmem:[%s220 + $0x60] sm:$0xff] %vm226, 0.0
        %240 = vst.msk [vmem:[%s220 + $0x68] sm:$0xff] %vm226, 0.0
        %241 = vst.msk [vmem:[%s220 + $0x70] sm:$0xff] %vm226, 0.0
        %242 = vst.msk [vmem:[%s220 + $0x78] sm:$0xff] %vm226, 0.0
      $region40: #{tpu_custom_call.1} parent=35 // pred_fallthru
        _
      %v243 = vld [vmem:[%s1] sm:$0xf]
      %v244 = vld [vmem:[%s1 + $0x4] sm:$0xf]
      %v245 = vld [vmem:[%s1 + $0x8] sm:$0xf]
      %v246 = vld [vmem:[%s1 + $0xc] sm:$0xf]
      %v247 = vld [vmem:[%s1 + $0x10] sm:$0xf]
      %v248 = vld [vmem:[%s1 + $0x14] sm:$0xf]
      %v249 = vld [vmem:[%s1 + $0x18] sm:$0xf]
      %v250 = vld [vmem:[%s1 + $0x1c] sm:$0xf]
      %v251 = vld [vmem:[%s1 + $0x20] sm:$0xf]
      %v252 = vld [vmem:[%s1 + $0x24] sm:$0xf]
      %v253 = vld [vmem:[%s1 + $0x28] sm:$0xf]
      %v254 = vld [vmem:[%s1 + $0x2c] sm:$0xf]
      %v255 = vld [vmem:[%s1 + $0x30] sm:$0xf]
      %v256 = vld [vmem:[%s1 + $0x34] sm:$0xf]
      %v257 = vld [vmem:[%s1 + $0x38] sm:$0xf]
      %v258 = vld [vmem:[%s1 + $0x3c] sm:$0xf]
      %v259 = vld [vmem:[%s215] sm:$0xf]
      %v260 = vld [vmem:[%s215 + $0x4] sm:$0xf]
      %v261 = vld [vmem:[%s215 + $0x8] sm:$0xf]
      %v262 = vld [vmem:[%s215 + $0xc] sm:$0xf]
      %v263 = vld [vmem:[%s215 + $0x10] sm:$0xf]
      %v264 = vld [vmem:[%s215 + $0x14] sm:$0xf]
      %v265 = vld [vmem:[%s2] sm:$0xff]
      %v266 = vld [vmem:[%s2 + $0x8] sm:$0xff]
      %v267 = vld [vmem:[%s2 + $0x10] sm:$0xff]
      %v268 = vld [vmem:[%s2 + $0x18] sm:$0xff]
      %v269 = vld [vmem:[%s2 + $0x20] sm:$0xff]
      %v270 = vld [vmem:[%s2 + $0x28] sm:$0xff]
      %v271 = vld [vmem:[%s2 + $0x30] sm:$0xff]
      %v272 = vld [vmem:[%s2 + $0x38] sm:$0xff]
      %v273 = vld [vmem:[%s2 + $0x40] sm:$0xff]
      %v274 = vld [vmem:[%s2 + $0x48] sm:$0xff]
      %v275 = vld [vmem:[%s2 + $0x50] sm:$0xff]
      %v276 = vld [vmem:[%s2 + $0x58] sm:$0xff]
      %v277 = vld [vmem:[%s2 + $0x60] sm:$0xff]
      %v278 = vld [vmem:[%s2 + $0x68] sm:$0xff]
      %v279 = vld [vmem:[%s2 + $0x70] sm:$0xff]
      %v280 = vld [vmem:[%s2 + $0x78] sm:$0xff]
      %282 = vset.pattern.permute.xlu0 0
      %283 = vperm.xlu0 %282, %v265
      %v284 = vpop.permute.xlu0 %283
      %287 = vset.pattern.permute.xlu0 0
      %288 = vperm.xlu0 %287, %v266
      %v289 = vpop.permute.xlu0 %288
      %292 = vset.pattern.permute.xlu0 0
      %293 = vperm.xlu0 %292, %v267
      %v294 = vpop.permute.xlu0 %293
      %297 = vset.pattern.permute.xlu0 0
      %298 = vperm.xlu0 %297, %v268
      %v299 = vpop.permute.xlu0 %298
      %302 = vset.pattern.permute.xlu0 0
      %303 = vperm.xlu0 %302, %v269
      %v304 = vpop.permute.xlu0 %303
      %307 = vset.pattern.permute.xlu0 0
      %308 = vperm.xlu0 %307, %v270
      %v309 = vpop.permute.xlu0 %308
      %312 = vset.pattern.permute.xlu0 0
      %313 = vperm.xlu0 %312, %v271
      %v314 = vpop.permute.xlu0 %313
      %317 = vset.pattern.permute.xlu0 0
      %318 = vperm.xlu0 %317, %v272
      %v319 = vpop.permute.xlu0 %318
      %322 = vset.pattern.permute.xlu0 0
      %323 = vperm.xlu0 %322, %v273
      %v324 = vpop.permute.xlu0 %323
      %327 = vset.pattern.permute.xlu0 0
      %328 = vperm.xlu0 %327, %v274
      %v329 = vpop.permute.xlu0 %328
      %332 = vset.pattern.permute.xlu0 0
      %333 = vperm.xlu0 %332, %v275
      %v334 = vpop.permute.xlu0 %333
      %337 = vset.pattern.permute.xlu0 0
      %338 = vperm.xlu0 %337, %v276
      %v339 = vpop.permute.xlu0 %338
      %342 = vset.pattern.permute.xlu0 0
      %343 = vperm.xlu0 %342, %v277
      %v344 = vpop.permute.xlu0 %343
      %347 = vset.pattern.permute.xlu0 0
      %348 = vperm.xlu0 %347, %v278
      %v349 = vpop.permute.xlu0 %348
      %352 = vset.pattern.permute.xlu0 0
      %353 = vperm.xlu0 %352, %v279
      %v354 = vpop.permute.xlu0 %353
      %357 = vset.pattern.permute.xlu0 0
      %358 = vperm.xlu0 %357, %v280
      %v359 = vpop.permute.xlu0 %358
      %v377 = vunpack.c.l.b16 %v243
      %v378 = vunpack.c.l.b16 %v244
      %v379 = vunpack.c.l.b16 %v245
      %v380 = vunpack.c.l.b16 %v246
      %v381 = vunpack.c.l.b16 %v247
      %v382 = vunpack.c.l.b16 %v248
      %v383 = vunpack.c.l.b16 %v249
      %v384 = vunpack.c.l.b16 %v250
      %v385 = vunpack.c.l.b16 %v251
      %v386 = vunpack.c.l.b16 %v252
      %v387 = vunpack.c.l.b16 %v253
      %v388 = vunpack.c.l.b16 %v254
      %v389 = vunpack.c.l.b16 %v255
      %v390 = vunpack.c.l.b16 %v256
      %v391 = vunpack.c.l.b16 %v257
      %v392 = vunpack.c.l.b16 %v258
      %v393 = vpack.c.b16 %v378, %v377
      %v394 = vpack.c.b16 %v380, %v379
      %v395 = vpack.c.b16 %v382, %v381
      %v396 = vpack.c.b16 %v384, %v383
      %v397 = vpack.c.b16 %v386, %v385
      %v398 = vpack.c.b16 %v388, %v387
      %v399 = vpack.c.b16 %v390, %v389
      %v400 = vpack.c.b16 %v392, %v391
      %v407 = vunpack.c.l.b16 %v259
      %v408 = vunpack.c.l.b16 %v260
      %v409 = vunpack.c.l.b16 %v261
      %v410 = vunpack.c.l.b16 %v262
      %v411 = vunpack.c.l.b16 %v263
      %v412 = vunpack.c.l.b16 %v264
      %v413 = vpack.c.b16 %v408, %v407
      %v414 = vpack.c.b16 %v410, %v409
      %v415 = vpack.c.b16 %v412, %v411
      %vm419 = vcmask 392192
      %v421 = vsel %vm419, %v393, 0
      %v424 = vsel %vm419, %v394, 0
      %v427 = vsel %vm419, %v395, 0
      %v430 = vsel %vm419, %v396, 0
      %v433 = vsel %vm419, %v397, 0
      %v436 = vsel %vm419, %v398, 0
      %v439 = vsel %vm419, %v399, 0
      %v442 = vsel %vm419, %v400, 0
      %444 = vmatprep.subr.bf16.mxu0 0
      %445 = vmatpush1.bf16.msra.mxu0 0
      %446 = vmatprep.subr.bf16.mxu0 0
      %447 = vmatpush1.bf16.msra.mxu0 0
      %448 = vmatprep.subr.bf16.mxu0 0
      %449 = vmatpush1.bf16.msra.mxu0 0
      %450 = vmatprep.subr.bf16.mxu0 0
      %451 = vmatpush1.bf16.msra.mxu0 0
      %452 = vmatprep.subr.bf16.mxu0 0
      %453 = vmatpush1.bf16.msra.mxu0 0
      %454 = vmatprep.subr.bf16.mxu0 0
      %455 = vmatpush1.bf16.msra.mxu0 %v415
      %456 = vmatprep.subr.bf16.mxu0 0
      %457 = vmatpush1.bf16.msra.mxu0 %v414
      %458 = vmatprep.subr.bf16.mxu0 0
      %459 = vmatpush1.bf16.msra.mxu0 %v413
      %460 = vmatprep.subr.bf16.mxu0 0
      %461 = vmatpush2.bf16.msra.mxu0 0
      %462 = vmatprep.subr.bf16.mxu0 0
      %463 = vmatpush2.bf16.msra.mxu0 0
      %464 = vmatprep.subr.bf16.mxu0 0
      %465 = vmatpush2.bf16.msra.mxu0 0
      %466 = vmatprep.subr.bf16.mxu0 0
      %467 = vmatpush2.bf16.msra.mxu0 0
      %468 = vmatprep.subr.bf16.mxu0 0
      %469 = vmatpush2.bf16.msra.mxu0 0
      %470 = vmatprep.subr.bf16.mxu0 0
      %471 = vmatpush2.bf16.msra.mxu0 0
      %472 = vmatprep.subr.bf16.mxu0 0
      %473 = vmatpush2.bf16.msra.mxu0 0
      %474 = vmatprep.subr.bf16.mxu0 0
      %475 = vmatpush2.bf16.msra.mxu0 0
      %476 = vmatprep.mubr.bf16.mxu0 0
      %477 = vmatmul.mubr.bf16.gmra.mxu0 %v421
      %v478 = vpop.f32.mrf.mxu0
      %v479 = vadd.f32 %v284, %v478
      %v480 = vpop.f32.mrf.mxu0
      %v481 = vpop.f32.mrf.mxu0
      %v482 = vadd.f32 %v289, %v481
      %v483 = vpop.f32.mrf.mxu0
      %484 = vmatprep.mubr.bf16.mxu0 0
      %485 = vmatmul.mubr.bf16.gmra.mxu0 %v424
      %v486 = vpop.f32.mrf.mxu0
      %v487 = vadd.f32 %v294, %v486
      %v488 = vpop.f32.mrf.mxu0
      %v489 = vpop.f32.mrf.mxu0
      %v490 = vadd.f32 %v299, %v489
      %v491 = vpop.f32.mrf.mxu0
      %492 = vmatprep.mubr.bf16.mxu0 0
      %493 = vmatmul.mubr.bf16.gmra.mxu0 %v427
      %v494 = vpop.f32.mrf.mxu0
      %v495 = vadd.f32 %v304, %v494
      %v496 = vpop.f32.mrf.mxu0
      %v497 = vpop.f32.mrf.mxu0
      %v498 = vadd.f32 %v309, %v497
      %v499 = vpop.f32.mrf.mxu0
      %500 = vmatprep.mubr.bf16.mxu0 0
      %501 = vmatmul.mubr.bf16.gmra.mxu0 %v430
      %v502 = vpop.f32.mrf.mxu0
      %v503 = vadd.f32 %v314, %v502
      %v504 = vpop.f32.mrf.mxu0
      %v505 = vpop.f32.mrf.mxu0
      %v506 = vadd.f32 %v319, %v505
      %v507 = vpop.f32.mrf.mxu0
      %508 = vmatprep.mubr.bf16.mxu0 0
      %509 = vmatmul.mubr.bf16.gmra.mxu0 %v433
      %v510 = vpop.f32.mrf.mxu0
      %v511 = vadd.f32 %v324, %v510
      %v512 = vpop.f32.mrf.mxu0
      %v513 = vpop.f32.mrf.mxu0
      %v514 = vadd.f32 %v329, %v513
      %v515 = vpop.f32.mrf.mxu0
      %516 = vmatprep.mubr.bf16.mxu0 0
      %517 = vmatmul.mubr.bf16.gmra.mxu0 %v436
      %v518 = vpop.f32.mrf.mxu0
      %v519 = vadd.f32 %v334, %v518
      %v520 = vpop.f32.mrf.mxu0
      %v521 = vpop.f32.mrf.mxu0
      %v522 = vadd.f32 %v339, %v521
      %v523 = vpop.f32.mrf.mxu0
      %524 = vmatprep.mubr.bf16.mxu0 0
      %525 = vmatmul.mubr.bf16.gmra.mxu0 %v439
      %v526 = vpop.f32.mrf.mxu0
      %v527 = vadd.f32 %v344, %v526
      %v528 = vpop.f32.mrf.mxu0
      %v529 = vpop.f32.mrf.mxu0
      %v530 = vadd.f32 %v349, %v529
      %v531 = vpop.f32.mrf.mxu0
      %532 = vmatprep.mubr.bf16.mxu0 0
      %533 = vmatmul.mubr.bf16.gmra.mxu0 %v442
      %v534 = vpop.f32.mrf.mxu0
      %v535 = vadd.f32 %v354, %v534
      %v536 = vpop.f32.mrf.mxu0
      %v537 = vpop.f32.mrf.mxu0
      %v538 = vadd.f32 %v359, %v537
      %v539 = vpop.f32.mrf.mxu0
      %540 = vdwg.mxu0
      %v541 = vmax.f32 %v479, 0.0
      %v542 = vmax.f32 %v482, 0.0
      %v543 = vmax.f32 %v487, 0.0
      %v544 = vmax.f32 %v490, 0.0
      %v545 = vmax.f32 %v495, 0.0
      %v546 = vmax.f32 %v498, 0.0
      %v547 = vmax.f32 %v503, 0.0
      %v548 = vmax.f32 %v506, 0.0
      %v549 = vmax.f32 %v511, 0.0
      %v550 = vmax.f32 %v514, 0.0
      %v551 = vmax.f32 %v519, 0.0
      %v552 = vmax.f32 %v522, 0.0
      %v553 = vmax.f32 %v527, 0.0
      %v554 = vmax.f32 %v530, 0.0
      %v555 = vmax.f32 %v535, 0.0
      %v556 = vmax.f32 %v538, 0.0
      %s557 = smul.u32 %s20, 64
      %s558 = sshra.s32 %s557, 3
      %s559 = sand.u32 %s557, 7
      %s560 = smul.addr %s558, 4
      %s561 = scalar_lea.vmem %s3, %s560
      %v562 = vld [vmem:[%s561] sm:$0xf]
      %v563 = vld [vmem:[%s561 + $0x4] sm:$0xf]
      %v564 = vld [vmem:[%s561 + $0x8] sm:$0xf]
      %v565 = vld [vmem:[%s561 + $0xc] sm:$0xf]
      %v566 = vld [vmem:[%s561 + $0x10] sm:$0xf]
      %v567 = vld [vmem:[%s561 + $0x14] sm:$0xf]
      %v568 = vld [vmem:[%s561 + $0x18] sm:$0xf]
      %v569 = vld [vmem:[%s561 + $0x1c] sm:$0xf]
      %v570 = vld [vmem:[%s220] sm:$0xff]
      %v571 = vld [vmem:[%s220 + $0x8] sm:$0xff]
      %v572 = vld [vmem:[%s220 + $0x10] sm:$0xff]
      %v573 = vld [vmem:[%s220 + $0x18] sm:$0xff]
      %v574 = vld [vmem:[%s220 + $0x20] sm:$0xff]
      %v575 = vld [vmem:[%s220 + $0x28] sm:$0xff]
      %v576 = vld [vmem:[%s220 + $0x30] sm:$0xff]
      %v577 = vld [vmem:[%s220 + $0x38] sm:$0xff]
      %v578 = vld [vmem:[%s220 + $0x40] sm:$0xff]
      %v579 = vld [vmem:[%s220 + $0x48] sm:$0xff]
      %v580 = vld [vmem:[%s220 + $0x50] sm:$0xff]
      %v581 = vld [vmem:[%s220 + $0x58] sm:$0xff]
      %v582 = vld [vmem:[%s220 + $0x60] sm:$0xff]
      %v583 = vld [vmem:[%s220 + $0x68] sm:$0xff]
      %v584 = vld [vmem:[%s220 + $0x70] sm:$0xff]
      %v585 = vld [vmem:[%s220 + $0x78] sm:$0xff]
      %v586 = vpack.c.bf16 %v542, %v541
      %v587 = vpack.c.bf16 %v544, %v543
      %v588 = vpack.c.bf16 %v546, %v545
      %v589 = vpack.c.bf16 %v548, %v547
      %v590 = vpack.c.bf16 %v550, %v549
      %v591 = vpack.c.bf16 %v552, %v551
      %v592 = vpack.c.bf16 %v554, %v553
      %v593 = vpack.c.bf16 %v556, %v555
      %v602 = vunpack.c.l.b16 %v562
      %v603 = vunpack.c.l.b16 %v563
      %v604 = vunpack.c.l.b16 %v564
      %v605 = vunpack.c.l.b16 %v565
      %v606 = vunpack.c.l.b16 %v566
      %v607 = vunpack.c.l.b16 %v567
      %v608 = vunpack.c.l.b16 %v568
      %v609 = vunpack.c.l.b16 %v569
      %v610 = vpack.c.b16 %v603, %v602
      %v611 = vpack.c.b16 %v605, %v604
      %v612 = vpack.c.b16 %v607, %v606
      %v613 = vpack.c.b16 %v609, %v608
      %vm618 = vcmask 523264
      %v620 = vsel %vm618, %v586, 0
      %v623 = vsel %vm618, %v587, 0
      %v626 = vsel %vm618, %v588, 0
      %v629 = vsel %vm618, %v589, 0
      %v632 = vsel %vm618, %v590, 0
      %v635 = vsel %vm618, %v591, 0
      %v638 = vsel %vm618, %v592, 0
      %v641 = vsel %vm618, %v593, 0
      %643 = vmatprep.subr.bf16.mxu0 0
      %644 = vmatpush1.bf16.msra.mxu0 0
      %645 = vmatprep.subr.bf16.mxu0 0
      %646 = vmatpush1.bf16.msra.mxu0 0
      %647 = vmatprep.subr.bf16.mxu0 0
      %648 = vmatpush1.bf16.msra.mxu0 0
      %649 = vmatprep.subr.bf16.mxu0 0
      %650 = vmatpush1.bf16.msra.mxu0 0
      %651 = vmatprep.subr.bf16.mxu0 0
      %652 = vmatpush1.bf16.msra.mxu0 %v613
      %653 = vmatprep.subr.bf16.mxu0 0
      %654 = vmatpush1.bf16.msra.mxu0 %v612
      %655 = vmatprep.subr.bf16.mxu0 0
      %656 = vmatpush1.bf16.msra.mxu0 %v611
      %657 = vmatprep.subr.bf16.mxu0 0
      %658 = vmatpush1.bf16.msra.mxu0 %v610
      %659 = vmatprep.subr.bf16.mxu0 0
      %660 = vmatpush2.bf16.msra.mxu0 0
      %661 = vmatprep.subr.bf16.mxu0 0
      %662 = vmatpush2.bf16.msra.mxu0 0
      %663 = vmatprep.subr.bf16.mxu0 0
      %664 = vmatpush2.bf16.msra.mxu0 0
      %665 = vmatprep.subr.bf16.mxu0 0
      %666 = vmatpush2.bf16.msra.mxu0 0
      %667 = vmatprep.subr.bf16.mxu0 0
      %668 = vmatpush2.bf16.msra.mxu0 0
      %669 = vmatprep.subr.bf16.mxu0 0
      %670 = vmatpush2.bf16.msra.mxu0 0
      %671 = vmatprep.subr.bf16.mxu0 0
      %672 = vmatpush2.bf16.msra.mxu0 0
      %673 = vmatprep.subr.bf16.mxu0 0
      %674 = vmatpush2.bf16.msra.mxu0 0
      %675 = vmatprep.mubr.bf16.mxu0 0
      %676 = vmatmul.mubr.bf16.gmra.mxu0 %v620
      %v677 = vpop.f32.mrf.mxu0
      %v678 = vadd.f32 0.0, %v677
      %v679 = vpop.f32.mrf.mxu0
      %v680 = vpop.f32.mrf.mxu0
      %v681 = vadd.f32 0.0, %v680
      %v682 = vpop.f32.mrf.mxu0
      %683 = vmatprep.mubr.bf16.mxu0 0
      %684 = vmatmul.mubr.bf16.gmra.mxu0 %v623
      %v685 = vpop.f32.mrf.mxu0
      %v686 = vadd.f32 0.0, %v685
      %v687 = vpop.f32.mrf.mxu0
      %v688 = vpop.f32.mrf.mxu0
      %v689 = vadd.f32 0.0, %v688
      %v690 = vpop.f32.mrf.mxu0
      %691 = vmatprep.mubr.bf16.mxu0 0
      %692 = vmatmul.mubr.bf16.gmra.mxu0 %v626
      %v693 = vpop.f32.mrf.mxu0
      %v694 = vadd.f32 0.0, %v693
      %v695 = vpop.f32.mrf.mxu0
      %v696 = vpop.f32.mrf.mxu0
      %v697 = vadd.f32 0.0, %v696
      %v698 = vpop.f32.mrf.mxu0
      %699 = vmatprep.mubr.bf16.mxu0 0
      %700 = vmatmul.mubr.bf16.gmra.mxu0 %v629
      %v701 = vpop.f32.mrf.mxu0
      %v702 = vadd.f32 0.0, %v701
      %v703 = vpop.f32.mrf.mxu0
      %v704 = vpop.f32.mrf.mxu0
      %v705 = vadd.f32 0.0, %v704
      %v706 = vpop.f32.mrf.mxu0
      %707 = vmatprep.mubr.bf16.mxu0 0
      %708 = vmatmul.mubr.bf16.gmra.mxu0 %v632
      %v709 = vpop.f32.mrf.mxu0
      %v710 = vadd.f32 0.0, %v709
      %v711 = vpop.f32.mrf.mxu0
      %v712 = vpop.f32.mrf.mxu0
      %v713 = vadd.f32 0.0, %v712
      %v714 = vpop.f32.mrf.mxu0
      %715 = vmatprep.mubr.bf16.mxu0 0
      %716 = vmatmul.mubr.bf16.gmra.mxu0 %v635
      %v717 = vpop.f32.mrf.mxu0
      %v718 = vadd.f32 0.0, %v717
      %v719 = vpop.f32.mrf.mxu0
      %v720 = vpop.f32.mrf.mxu0
      %v721 = vadd.f32 0.0, %v720
      %v722 = vpop.f32.mrf.mxu0
      %723 = vmatprep.mubr.bf16.mxu0 0
      %724 = vmatmul.mubr.bf16.gmra.mxu0 %v638
      %v725 = vpop.f32.mrf.mxu0
      %v726 = vadd.f32 0.0, %v725
      %v727 = vpop.f32.mrf.mxu0
      %v728 = vpop.f32.mrf.mxu0
      %v729 = vadd.f32 0.0, %v728
      %v730 = vpop.f32.mrf.mxu0
      %731 = vmatprep.mubr.bf16.mxu0 0
      %732 = vmatmul.mubr.bf16.gmra.mxu0 %v641
      %v733 = vpop.f32.mrf.mxu0
      %v734 = vadd.f32 0.0, %v733
      %v735 = vpop.f32.mrf.mxu0
      %v736 = vpop.f32.mrf.mxu0
      %v737 = vadd.f32 0.0, %v736
      %v738 = vpop.f32.mrf.mxu0
      %739 = vdwg.mxu0
      %v740 = vadd.f32 %v570, %v678
      %v741 = vadd.f32 %v571, %v681
      %v742 = vadd.f32 %v572, %v686
      %v743 = vadd.f32 %v573, %v689
      %v744 = vadd.f32 %v574, %v694
      %v745 = vadd.f32 %v575, %v697
      %v746 = vadd.f32 %v576, %v702
      %v747 = vadd.f32 %v577, %v705
      %v748 = vadd.f32 %v578, %v710
      %v749 = vadd.f32 %v579, %v713
      %v750 = vadd.f32 %v580, %v718
      %v751 = vadd.f32 %v581, %v721
      %v752 = vadd.f32 %v582, %v726
      %v753 = vadd.f32 %v583, %v729
      %v754 = vadd.f32 %v584, %v734
      %v755 = vadd.f32 %v585, %v737
      %vm756 = vcmask 130048
      %757 = vst.msk [vmem:[%s220] sm:$0xff] %vm756, %v740
      %758 = vst.msk [vmem:[%s220 + $0x8] sm:$0xff] %vm756, %v741
      %759 = vst.msk [vmem:[%s220 + $0x10] sm:$0xff] %vm756, %v742
      %760 = vst.msk [vmem:[%s220 + $0x18] sm:$0xff] %vm756, %v743
      %761 = vst.msk [vmem:[%s220 + $0x20] sm:$0xff] %vm756, %v744
      %762 = vst.msk [vmem:[%s220 + $0x28] sm:$0xff] %vm756, %v745
      %763 = vst.msk [vmem:[%s220 + $0x30] sm:$0xff] %vm756, %v746
      %764 = vst.msk [vmem:[%s220 + $0x38] sm:$0xff] %vm756, %v747
      %765 = vst.msk [vmem:[%s220 + $0x40] sm:$0xff] %vm756, %v748
      %766 = vst.msk [vmem:[%s220 + $0x48] sm:$0xff] %vm756, %v749
      %767 = vst.msk [vmem:[%s220 + $0x50] sm:$0xff] %vm756, %v750
      %768 = vst.msk [vmem:[%s220 + $0x58] sm:$0xff] %vm756, %v751
      %769 = vst.msk [vmem:[%s220 + $0x60] sm:$0xff] %vm756, %v752
      %770 = vst.msk [vmem:[%s220 + $0x68] sm:$0xff] %vm756, %v753
      %771 = vst.msk [vmem:[%s220 + $0x70] sm:$0xff] %vm756, %v754
      %772 = vst.msk [vmem:[%s220 + $0x78] sm:$0xff] %vm756, %v755
      %p773 = scmp.lt.s32.totalorder %s19, 1
      %s774 = scalar_select %p773, %s19, 1
      %s775 = smul.addr %s774, 16
      %s776 = smul.addr %s775, 8
      %s777 = scalar_lea.vmem %s4, %s776
      // Predicated region
      $region41: #{tpu_custom_call.1} parent=35 // pred_check
        %p778 = pneg %p136
      $region42: #{tpu_custom_call.1} parent=35 // pred_check_branch
        %780 = sbr.rel (%p778) target = $region44
      $region43: #{tpu_custom_call.1} parent=35 // pred_region
        _
      $region44: #{tpu_custom_call.1} parent=35 // pred_fallthru
        _
    $region36: #{tpu_custom_call.1} parent=5 // pred_fallthru
      _
    %p781 = scmp.le.s32.totalorder 2, %s10
    // Predicated region
    $region45: #{tpu_custom_call.1} parent=5 // pred_check
      %p782 = pneg %p781
    $region46: #{tpu_custom_call.1} parent=5 // pred_check_branch
      %784 = sbr.rel (%p782) target = $region48
    $region47: #{tpu_custom_call.1} parent=5 // pred_region
      %s785 = ssub.s32 %s10, 2
      // Predicated region
      $region49: #{tpu_custom_call.1} parent=47 // pred_check
        %p786 = pneg %p142
      $region50: #{tpu_custom_call.1} parent=47 // pred_check_branch
        %788 = sbr.rel (%p786) target = $region52
      $region51: #{tpu_custom_call.1} parent=47 // pred_region
        %p789 = scmp.lt.s32.totalorder %s21, 1
        %s790 = scalar_select %p789, %s21, 1
        %s791 = smul.addr %s790, 16
        %s792 = smul.addr %s791, 8
        %s793 = scalar_lea.vmem %s4, %s792
      $region52: #{tpu_custom_call.1} parent=47 // pred_fallthru
        _
    $region48: #{tpu_custom_call.1} parent=5 // pred_fallthru
      _
  $region6: #{tpu_custom_call.1} parent=0 // loop_footer
    %s14 = sadd.s32 1, %s10
  $region7: #{tpu_custom_call.1} parent=0 // loop_footer_branch
    %9 = sbr.rel target = $region3
  $region8: #{tpu_custom_call.1} parent=0 // loop_exit
    _

</llo_original>
